<compile_context>
chip_gen: v5e
topology: v5e:2x2
jax: 0.10.0
libtpu: 0.0.40
codegen_flags: <defaults>
</compile_context>

<pallas_src>
import jax
import jax.numpy as jnp
from jax.experimental import pallas as pl
from jax.experimental.pallas import tpu as pltpu  # noqa: F401  (TPU backend)


def lstm_kernel(embeds_ref, wihT_ref, whhT_ref, b_ref, woutT_ref, bout_ref, out_ref):
    S, H = embeds_ref.shape

    # Batched input projection for all timesteps: (S, H) @ (H, 4H) + (1, 4H).
    xproj = (
        jnp.dot(embeds_ref[...], wihT_ref[...], preferred_element_type=jnp.float32)
        + b_ref[...]
    )
    whhT = whhT_ref[...]

    # Register-resident recurrent state (nn.LSTM default zero init).
    h = jnp.zeros((1, H), jnp.float32)
    c = jnp.zeros((1, H), jnp.float32)

    # Fully unrolled recurrence (S is static): static slice indices, no VMEM
    # traffic on the critical path; equivalent to fori_loop(..., unroll=True).
    h_rows = []
    for t in range(S):
        gates = xproj[t:t + 1, :] + jnp.dot(
            h, whhT, preferred_element_type=jnp.float32
        )                                   # (1, 4H) — one vreg
        sig = jax.nn.sigmoid(gates)         # one full-vreg EUP pass (covers i, f, o)
        tnh = jnp.tanh(gates)               # one full-vreg EUP pass (covers g)
        i_g = sig[:, 0 * H:1 * H]
        f_g = sig[:, 1 * H:2 * H]
        g_g = tnh[:, 2 * H:3 * H]
        o_g = sig[:, 3 * H:4 * H]
        c = f_g * c + i_g * g_g
        h = o_g * jnp.tanh(c)
        h_rows.append(h)

    # Assemble the (S, H) hidden-state block in registers (single use below).
    h_all = jnp.concatenate(h_rows, axis=0)

    # Output Linear on lane-padded weights: (S, H) @ (H, O_pad) + (1, O_pad).
    out_ref[...] = (
        jnp.dot(h_all, woutT_ref[...], preferred_element_type=jnp.float32)
        + bout_ref[...]
    )


def music_lstm_forward(x_tokens, params):
    """x_tokens: int32 (S,).  Returns logits (S, output_size)."""
    emb_table = params["emb"]          # (V, H)
    wih = params["w_ih"]               # (4H, H)
    whh = params["w_hh"]               # (4H, H)
    bih = params["b_ih"]               # (4H,)
    bhh = params["b_hh"]               # (4H,)
    wout = params["w_out"]             # (O, H)
    bout = params["b_out"]             # (O,)

    S = x_tokens.shape[0]
    H = emb_table.shape[1]
    O = wout.shape[0]
    O_pad = ((O + 127) // 128) * 128   # lane-dense output width (unmasked vst)

    # Embedding lookup (glue): pure index gather on the table, done in XLA.
    embeds = jnp.take(emb_table, x_tokens, axis=0).astype(jnp.float32)   # (S, H)

    # Pre-transpose / fuse biases once in the wrapper (weights are static).
    wihT = wih.T.astype(jnp.float32)                             # (H, 4H)
    whhT = whh.T.astype(jnp.float32)                             # (H, 4H)
    b = (bih + bhh).reshape(1, 4 * H).astype(jnp.float32)        # (1, 4H)
    woutT = jnp.zeros((H, O_pad), jnp.float32).at[:, :O].set(
        wout.T.astype(jnp.float32))                              # (H, O_pad)
    bout_p = jnp.zeros((1, O_pad), jnp.float32).at[:, :O].set(
        bout.astype(jnp.float32))                                # (1, O_pad)

    def full_spec(shape):
        # Whole-array block, no grid: index_map takes no args.
        return pl.BlockSpec(shape, lambda: tuple(0 for _ in shape))

    out_padded = pl.pallas_call(
        lstm_kernel,
        out_shape=jax.ShapeDtypeStruct((S, O_pad), jnp.float32),
        in_specs=[
            full_spec((S, H)),          # embeds
            full_spec((H, 4 * H)),      # wihT
            full_spec((H, 4 * H)),      # whhT
            full_spec((1, 4 * H)),      # fused bias
            full_spec((H, O_pad)),      # woutT (lane-padded)
            full_spec((1, O_pad)),      # bout  (lane-padded)
        ],
        out_specs=full_spec((S, O_pad)),
    )(embeds, wihT, whhT, b, woutT, bout_p)

    return out_padded[:, :O]


def music_lstm_ref(x_tokens, params):
    """Pure-JAX reference mirroring the PyTorch forward (batch=1 path)."""
    emb = jnp.take(params["emb"], x_tokens, axis=0)
    H = params["w_hh"].shape[1]
    wih, whh = params["w_ih"], params["w_hh"]
    bih, bhh = params["b_ih"], params["b_hh"]
    h = jnp.zeros((1, H), jnp.float32)
    c = jnp.zeros((1, H), jnp.float32)
    hs = []
    for t in range(emb.shape[0]):
        x_t = emb[t:t + 1]
        gates = x_t @ wih.T + bih + h @ whh.T + bhh
        i = jax.nn.sigmoid(gates[:, 0 * H:1 * H])
        f = jax.nn.sigmoid(gates[:, 1 * H:2 * H])
        g = jnp.tanh(gates[:, 2 * H:3 * H])
        o = jax.nn.sigmoid(gates[:, 3 * H:4 * H])
        c = f * c + i * g
        h = o * jnp.tanh(c)
        hs.append(h)
    rnn_out = jnp.concatenate(hs, axis=0)
    return rnn_out @ params["w_out"].T + params["b_out"]


def init_params(key, input_size, hidden_size, output_size):
    ks = jax.random.split(key, 7)
    H = hidden_size
    s = 1.0 / jnp.sqrt(H)
    return {
        "emb": jax.random.normal(ks[0], (input_size, H), jnp.float32),
        "w_ih": jax.random.uniform(ks[1], (4 * H, H), jnp.float32, -s, s),
        "w_hh": jax.random.uniform(ks[2], (4 * H, H), jnp.float32, -s, s),
        "b_ih": jax.random.uniform(ks[3], (4 * H,), jnp.float32, -s, s),
        "b_hh": jax.random.uniform(ks[4], (4 * H,), jnp.float32, -s, s),
        "w_out": jax.random.uniform(ks[5], (output_size, H), jnp.float32, -s, s),
        "b_out": jax.random.uniform(ks[6], (output_size,), jnp.float32, -s, s),
    }


if __name__ == "__main__":
    INPUT_SIZE = 16    # vocab
    HIDDEN = 32
    OUTPUT = 16
    SEQ = 8

    key = jax.random.PRNGKey(0)
    pkey, xkey = jax.random.split(key)
    params = init_params(pkey, INPUT_SIZE, HIDDEN, OUTPUT)
    x = jax.random.randint(xkey, (SEQ,), 0, INPUT_SIZE, dtype=jnp.int32)

    out = music_lstm_forward(x, params)
    out = jax.block_until_ready(out)

    ref = music_lstm_ref(x, params)
    assert out.shape == (SEQ, OUTPUT)
    assert jnp.allclose(out, ref, atol=1e-5, rtol=1e-5), "mismatch vs reference"

    print("KERNEL_OK")
</pallas_src>

<mosaic_0001>
module attributes {stable_mosaic.version = 11 : i64} {
  func.func @lstm_kernel(%arg0: memref<8x32xf32, #tpu.memory_space<vmem>>, %arg1: memref<32x128xf32, #tpu.memory_space<vmem>>, %arg2: memref<32x128xf32, #tpu.memory_space<vmem>>, %arg3: memref<1x128xf32, #tpu.memory_space<vmem>>, %arg4: memref<32x128xf32, #tpu.memory_space<vmem>>, %arg5: memref<1x128xf32, #tpu.memory_space<vmem>>, %arg6: memref<8x128xf32, #tpu.memory_space<vmem>>) attributes {dimension_semantics = [], scalar_prefetch = 0 : i64, scratch_operands = 0 : i64, tpu.core_type = #tpu.core_type<tc>} {
    %c0 = arith.constant 0 : index
    %c0_0 = arith.constant 0 : index
    %0 = vector.load %arg0[%c0, %c0_0] : memref<8x32xf32, #tpu.memory_space<vmem>>, vector<8x32xf32>
    %c0_1 = arith.constant 0 : index
    %c0_2 = arith.constant 0 : index
    %1 = vector.load %arg1[%c0_1, %c0_2] : memref<32x128xf32, #tpu.memory_space<vmem>>, vector<32x128xf32>
    %cst = arith.constant dense<0.000000e+00> : vector<8x128xf32>
    %2 = tpu.matmul %0, %1, %cst {dimension_numbers = #tpu.dot_dimension_numbers<[1], [0], [0], [1], [0, 0, 1, 1], [], []>} : vector<8x32xf32>, vector<32x128xf32>, vector<8x128xf32> -> vector<8x128xf32>
    %c0_3 = arith.constant 0 : index
    %c0_4 = arith.constant 0 : index
    %3 = vector.load %arg3[%c0_3, %c0_4] : memref<1x128xf32, #tpu.memory_space<vmem>>, vector<1x128xf32>
    %4 = vector.broadcast %3 : vector<1x128xf32> to vector<8x128xf32>
    %5 = arith.addf %2, %4 : vector<8x128xf32>
    %c0_5 = arith.constant 0 : index
    %c0_6 = arith.constant 0 : index
    %6 = vector.load %arg2[%c0_5, %c0_6] : memref<32x128xf32, #tpu.memory_space<vmem>>, vector<32x128xf32>
    %cst_7 = arith.constant 0.000000e+00 : f32
    %7 = vector.broadcast %cst_7 : f32 to vector<1x32xf32>
    %cst_8 = arith.constant 0.000000e+00 : f32
    %8 = vector.broadcast %cst_8 : f32 to vector<1x32xf32>
    %9 = vector.extract_strided_slice %5 {offsets = [0, 0], sizes = [1, 128], strides = [1, 1]} : vector<8x128xf32> to vector<1x128xf32>
    %cst_9 = arith.constant dense<0.000000e+00> : vector<1x128xf32>
    %10 = tpu.matmul %7, %6, %cst_9 {dimension_numbers = #tpu.dot_dimension_numbers<[1], [0], [0], [1], [0, 0, 1, 1], [], []>} : vector<1x32xf32>, vector<32x128xf32>, vector<1x128xf32> -> vector<1x128xf32>
    %11 = arith.addf %9, %10 : vector<1x128xf32>
    %12 = arith.negf %11 : vector<1x128xf32>
    %13 = math.exp %12 : vector<1x128xf32>
    %cst_10 = arith.constant 1.000000e+00 : f32
    %14 = vector.broadcast %cst_10 : f32 to vector<1x128xf32>
    %15 = arith.addf %14, %13 : vector<1x128xf32>
    %16 = arith.divf %14, %15 : vector<1x128xf32>
    %17 = math.tanh %11 : vector<1x128xf32>
    %18 = vector.extract_strided_slice %16 {offsets = [0, 0], sizes = [1, 32], strides = [1, 1]} : vector<1x128xf32> to vector<1x32xf32>
    %19 = vector.extract_strided_slice %16 {offsets = [0, 32], sizes = [1, 32], strides = [1, 1]} : vector<1x128xf32> to vector<1x32xf32>
    %20 = vector.extract_strided_slice %17 {offsets = [0, 64], sizes = [1, 32], strides = [1, 1]} : vector<1x128xf32> to vector<1x32xf32>
    %21 = vector.extract_strided_slice %16 {offsets = [0, 96], sizes = [1, 32], strides = [1, 1]} : vector<1x128xf32> to vector<1x32xf32>
    %22 = arith.mulf %19, %8 : vector<1x32xf32>
    %23 = arith.mulf %18, %20 : vector<1x32xf32>
    %24 = arith.addf %22, %23 : vector<1x32xf32>
    %25 = math.tanh %24 : vector<1x32xf32>
    %26 = arith.mulf %21, %25 : vector<1x32xf32>
    %27 = vector.extract_strided_slice %5 {offsets = [1, 0], sizes = [1, 128], strides = [1, 1]} : vector<8x128xf32> to vector<1x128xf32>
    %cst_11 = arith.constant dense<0.000000e+00> : vector<1x128xf32>
    %28 = tpu.matmul %26, %6, %cst_11 {dimension_numbers = #tpu.dot_dimension_numbers<[1], [0], [0], [1], [0, 0, 1, 1], [], []>} : vector<1x32xf32>, vector<32x128xf32>, vector<1x128xf32> -> vector<1x128xf32>
    %29 = arith.addf %27, %28 : vector<1x128xf32>
    %30 = arith.negf %29 : vector<1x128xf32>
    %31 = math.exp %30 : vector<1x128xf32>
    %cst_12 = arith.constant 1.000000e+00 : f32
    %32 = vector.broadcast %cst_12 : f32 to vector<1x128xf32>
    %33 = arith.addf %32, %31 : vector<1x128xf32>
    %34 = arith.divf %32, %33 : vector<1x128xf32>
    %35 = math.tanh %29 : vector<1x128xf32>
    %36 = vector.extract_strided_slice %34 {offsets = [0, 0], sizes = [1, 32], strides = [1, 1]} : vector<1x128xf32> to vector<1x32xf32>
    %37 = vector.extract_strided_slice %34 {offsets = [0, 32], sizes = [1, 32], strides = [1, 1]} : vector<1x128xf32> to vector<1x32xf32>
    %38 = vector.extract_strided_slice %35 {offsets = [0, 64], sizes = [1, 32], strides = [1, 1]} : vector<1x128xf32> to vector<1x32xf32>
    %39 = vector.extract_strided_slice %34 {offsets = [0, 96], sizes = [1, 32], strides = [1, 1]} : vector<1x128xf32> to vector<1x32xf32>
    %40 = arith.mulf %37, %24 : vector<1x32xf32>
    %41 = arith.mulf %36, %38 : vector<1x32xf32>
    %42 = arith.addf %40, %41 : vector<1x32xf32>
    %43 = math.tanh %42 : vector<1x32xf32>
    %44 = arith.mulf %39, %43 : vector<1x32xf32>
    %45 = vector.extract_strided_slice %5 {offsets = [2, 0], sizes = [1, 128], strides = [1, 1]} : vector<8x128xf32> to vector<1x128xf32>
    %cst_13 = arith.constant dense<0.000000e+00> : vector<1x128xf32>
    %46 = tpu.matmul %44, %6, %cst_13 {dimension_numbers = #tpu.dot_dimension_numbers<[1], [0], [0], [1], [0, 0, 1, 1], [], []>} : vector<1x32xf32>, vector<32x128xf32>, vector<1x128xf32> -> vector<1x128xf32>
    %47 = arith.addf %45, %46 : vector<1x128xf32>
    %48 = arith.negf %47 : vector<1x128xf32>
    %49 = math.exp %48 : vector<1x128xf32>
    %cst_14 = arith.constant 1.000000e+00 : f32
    %50 = vector.broadcast %cst_14 : f32 to vector<1x128xf32>
    %51 = arith.addf %50, %49 : vector<1x128xf32>
    %52 = arith.divf %50, %51 : vector<1x128xf32>
    %53 = math.tanh %47 : vector<1x128xf32>
    %54 = vector.extract_strided_slice %52 {offsets = [0, 0], sizes = [1, 32], strides = [1, 1]} : vector<1x128xf32> to vector<1x32xf32>
    %55 = vector.extract_strided_slice %52 {offsets = [0, 32], sizes = [1, 32], strides = [1, 1]} : vector<1x128xf32> to vector<1x32xf32>
    %56 = vector.extract_strided_slice %53 {offsets = [0, 64], sizes = [1, 32], strides = [1, 1]} : vector<1x128xf32> to vector<1x32xf32>
    %57 = vector.extract_strided_slice %52 {offsets = [0, 96], sizes = [1, 32], strides = [1, 1]} : vector<1x128xf32> to vector<1x32xf32>
    %58 = arith.mulf %55, %42 : vector<1x32xf32>
    %59 = arith.mulf %54, %56 : vector<1x32xf32>
    %60 = arith.addf %58, %59 : vector<1x32xf32>
    %61 = math.tanh %60 : vector<1x32xf32>
    %62 = arith.mulf %57, %61 : vector<1x32xf32>
    %63 = vector.extract_strided_slice %5 {offsets = [3, 0], sizes = [1, 128], strides = [1, 1]} : vector<8x128xf32> to vector<1x128xf32>
    %cst_15 = arith.constant dense<0.000000e+00> : vector<1x128xf32>
    %64 = tpu.matmul %62, %6, %cst_15 {dimension_numbers = #tpu.dot_dimension_numbers<[1], [0], [0], [1], [0, 0, 1, 1], [], []>} : vector<1x32xf32>, vector<32x128xf32>, vector<1x128xf32> -> vector<1x128xf32>
    %65 = arith.addf %63, %64 : vector<1x128xf32>
    %66 = arith.negf %65 : vector<1x128xf32>
    %67 = math.exp %66 : vector<1x128xf32>
    %cst_16 = arith.constant 1.000000e+00 : f32
    %68 = vector.broadcast %cst_16 : f32 to vector<1x128xf32>
    %69 = arith.addf %68, %67 : vector<1x128xf32>
    %70 = arith.divf %68, %69 : vector<1x128xf32>
    %71 = math.tanh %65 : vector<1x128xf32>
    %72 = vector.extract_strided_slice %70 {offsets = [0, 0], sizes = [1, 32], strides = [1, 1]} : vector<1x128xf32> to vector<1x32xf32>
    %73 = vector.extract_strided_slice %70 {offsets = [0, 32], sizes = [1, 32], strides = [1, 1]} : vector<1x128xf32> to vector<1x32xf32>
    %74 = vector.extract_strided_slice %71 {offsets = [0, 64], sizes = [1, 32], strides = [1, 1]} : vector<1x128xf32> to vector<1x32xf32>
    %75 = vector.extract_strided_slice %70 {offsets = [0, 96], sizes = [1, 32], strides = [1, 1]} : vector<1x128xf32> to vector<1x32xf32>
    %76 = arith.mulf %73, %60 : vector<1x32xf32>
    %77 = arith.mulf %72, %74 : vector<1x32xf32>
    %78 = arith.addf %76, %77 : vector<1x32xf32>
    %79 = math.tanh %78 : vector<1x32xf32>
    %80 = arith.mulf %75, %79 : vector<1x32xf32>
    %81 = vector.extract_strided_slice %5 {offsets = [4, 0], sizes = [1, 128], strides = [1, 1]} : vector<8x128xf32> to vector<1x128xf32>
    %cst_17 = arith.constant dense<0.000000e+00> : vector<1x128xf32>
    %82 = tpu.matmul %80, %6, %cst_17 {dimension_numbers = #tpu.dot_dimension_numbers<[1], [0], [0], [1], [0, 0, 1, 1], [], []>} : vector<1x32xf32>, vector<32x128xf32>, vector<1x128xf32> -> vector<1x128xf32>
    %83 = arith.addf %81, %82 : vector<1x128xf32>
    %84 = arith.negf %83 : vector<1x128xf32>
    %85 = math.exp %84 : vector<1x128xf32>
    %cst_18 = arith.constant 1.000000e+00 : f32
    %86 = vector.broadcast %cst_18 : f32 to vector<1x128xf32>
    %87 = arith.addf %86, %85 : vector<1x128xf32>
    %88 = arith.divf %86, %87 : vector<1x128xf32>
    %89 = math.tanh %83 : vector<1x128xf32>
    %90 = vector.extract_strided_slice %88 {offsets = [0, 0], sizes = [1, 32], strides = [1, 1]} : vector<1x128xf32> to vector<1x32xf32>
    %91 = vector.extract_strided_slice %88 {offsets = [0, 32], sizes = [1, 32], strides = [1, 1]} : vector<1x128xf32> to vector<1x32xf32>
    %92 = vector.extract_strided_slice %89 {offsets = [0, 64], sizes = [1, 32], strides = [1, 1]} : vector<1x128xf32> to vector<1x32xf32>
    %93 = vector.extract_strided_slice %88 {offsets = [0, 96], sizes = [1, 32], strides = [1, 1]} : vector<1x128xf32> to vector<1x32xf32>
    %94 = arith.mulf %91, %78 : vector<1x32xf32>
    %95 = arith.mulf %90, %92 : vector<1x32xf32>
    %96 = arith.addf %94, %95 : vector<1x32xf32>
    %97 = math.tanh %96 : vector<1x32xf32>
    %98 = arith.mulf %93, %97 : vector<1x32xf32>
    %99 = vector.extract_strided_slice %5 {offsets = [5, 0], sizes = [1, 128], strides = [1, 1]} : vector<8x128xf32> to vector<1x128xf32>
    %cst_19 = arith.constant dense<0.000000e+00> : vector<1x128xf32>
    %100 = tpu.matmul %98, %6, %cst_19 {dimension_numbers = #tpu.dot_dimension_numbers<[1], [0], [0], [1], [0, 0, 1, 1], [], []>} : vector<1x32xf32>, vector<32x128xf32>, vector<1x128xf32> -> vector<1x128xf32>
    %101 = arith.addf %99, %100 : vector<1x128xf32>
    %102 = arith.negf %101 : vector<1x128xf32>
    %103 = math.exp %102 : vector<1x128xf32>
    %cst_20 = arith.constant 1.000000e+00 : f32
    %104 = vector.broadcast %cst_20 : f32 to vector<1x128xf32>
    %105 = arith.addf %104, %103 : vector<1x128xf32>
    %106 = arith.divf %104, %105 : vector<1x128xf32>
    %107 = math.tanh %101 : vector<1x128xf32>
    %108 = vector.extract_strided_slice %106 {offsets = [0, 0], sizes = [1, 32], strides = [1, 1]} : vector<1x128xf32> to vector<1x32xf32>
    %109 = vector.extract_strided_slice %106 {offsets = [0, 32], sizes = [1, 32], strides = [1, 1]} : vector<1x128xf32> to vector<1x32xf32>
    %110 = vector.extract_strided_slice %107 {offsets = [0, 64], sizes = [1, 32], strides = [1, 1]} : vector<1x128xf32> to vector<1x32xf32>
    %111 = vector.extract_strided_slice %106 {offsets = [0, 96], sizes = [1, 32], strides = [1, 1]} : vector<1x128xf32> to vector<1x32xf32>
    %112 = arith.mulf %109, %96 : vector<1x32xf32>
    %113 = arith.mulf %108, %110 : vector<1x32xf32>
    %114 = arith.addf %112, %113 : vector<1x32xf32>
    %115 = math.tanh %114 : vector<1x32xf32>
    %116 = arith.mulf %111, %115 : vector<1x32xf32>
    %117 = vector.extract_strided_slice %5 {offsets = [6, 0], sizes = [1, 128], strides = [1, 1]} : vector<8x128xf32> to vector<1x128xf32>
    %cst_21 = arith.constant dense<0.000000e+00> : vector<1x128xf32>
    %118 = tpu.matmul %116, %6, %cst_21 {dimension_numbers = #tpu.dot_dimension_numbers<[1], [0], [0], [1], [0, 0, 1, 1], [], []>} : vector<1x32xf32>, vector<32x128xf32>, vector<1x128xf32> -> vector<1x128xf32>
    %119 = arith.addf %117, %118 : vector<1x128xf32>
    %120 = arith.negf %119 : vector<1x128xf32>
    %121 = math.exp %120 : vector<1x128xf32>
    %cst_22 = arith.constant 1.000000e+00 : f32
    %122 = vector.broadcast %cst_22 : f32 to vector<1x128xf32>
    %123 = arith.addf %122, %121 : vector<1x128xf32>
    %124 = arith.divf %122, %123 : vector<1x128xf32>
    %125 = math.tanh %119 : vector<1x128xf32>
    %126 = vector.extract_strided_slice %124 {offsets = [0, 0], sizes = [1, 32], strides = [1, 1]} : vector<1x128xf32> to vector<1x32xf32>
    %127 = vector.extract_strided_slice %124 {offsets = [0, 32], sizes = [1, 32], strides = [1, 1]} : vector<1x128xf32> to vector<1x32xf32>
    %128 = vector.extract_strided_slice %125 {offsets = [0, 64], sizes = [1, 32], strides = [1, 1]} : vector<1x128xf32> to vector<1x32xf32>
    %129 = vector.extract_strided_slice %124 {offsets = [0, 96], sizes = [1, 32], strides = [1, 1]} : vector<1x128xf32> to vector<1x32xf32>
    %130 = arith.mulf %127, %114 : vector<1x32xf32>
    %131 = arith.mulf %126, %128 : vector<1x32xf32>
    %132 = arith.addf %130, %131 : vector<1x32xf32>
    %133 = math.tanh %132 : vector<1x32xf32>
    %134 = arith.mulf %129, %133 : vector<1x32xf32>
    %135 = vector.extract_strided_slice %5 {offsets = [7, 0], sizes = [1, 128], strides = [1, 1]} : vector<8x128xf32> to vector<1x128xf32>
    %cst_23 = arith.constant dense<0.000000e+00> : vector<1x128xf32>
    %136 = tpu.matmul %134, %6, %cst_23 {dimension_numbers = #tpu.dot_dimension_numbers<[1], [0], [0], [1], [0, 0, 1, 1], [], []>} : vector<1x32xf32>, vector<32x128xf32>, vector<1x128xf32> -> vector<1x128xf32>
    %137 = arith.addf %135, %136 : vector<1x128xf32>
    %138 = arith.negf %137 : vector<1x128xf32>
    %139 = math.exp %138 : vector<1x128xf32>
    %cst_24 = arith.constant 1.000000e+00 : f32
    %140 = vector.broadcast %cst_24 : f32 to vector<1x128xf32>
    %141 = arith.addf %140, %139 : vector<1x128xf32>
    %142 = arith.divf %140, %141 : vector<1x128xf32>
    %143 = math.tanh %137 : vector<1x128xf32>
    %144 = vector.extract_strided_slice %142 {offsets = [0, 0], sizes = [1, 32], strides = [1, 1]} : vector<1x128xf32> to vector<1x32xf32>
    %145 = vector.extract_strided_slice %142 {offsets = [0, 32], sizes = [1, 32], strides = [1, 1]} : vector<1x128xf32> to vector<1x32xf32>
    %146 = vector.extract_strided_slice %143 {offsets = [0, 64], sizes = [1, 32], strides = [1, 1]} : vector<1x128xf32> to vector<1x32xf32>
    %147 = vector.extract_strided_slice %142 {offsets = [0, 96], sizes = [1, 32], strides = [1, 1]} : vector<1x128xf32> to vector<1x32xf32>
    %148 = arith.mulf %145, %132 : vector<1x32xf32>
    %149 = arith.mulf %144, %146 : vector<1x32xf32>
    %150 = arith.addf %148, %149 : vector<1x32xf32>
    %151 = math.tanh %150 : vector<1x32xf32>
    %152 = arith.mulf %147, %151 : vector<1x32xf32>
    %153 = tpu.concatenate %26, %44, %62, %80, %98, %116, %134, %152 in 0 : vector<1x32xf32>, vector<1x32xf32>, vector<1x32xf32>, vector<1x32xf32>, vector<1x32xf32>, vector<1x32xf32>, vector<1x32xf32>, vector<1x32xf32> -> vector<8x32xf32>
    %c0_25 = arith.constant 0 : index
    %c0_26 = arith.constant 0 : index
    %154 = vector.load %arg4[%c0_25, %c0_26] : memref<32x128xf32, #tpu.memory_space<vmem>>, vector<32x128xf32>
    %cst_27 = arith.constant dense<0.000000e+00> : vector<8x128xf32>
    %155 = tpu.matmul %153, %154, %cst_27 {dimension_numbers = #tpu.dot_dimension_numbers<[1], [0], [0], [1], [0, 0, 1, 1], [], []>} : vector<8x32xf32>, vector<32x128xf32>, vector<8x128xf32> -> vector<8x128xf32>
    %c0_28 = arith.constant 0 : index
    %c0_29 = arith.constant 0 : index
    %156 = vector.load %arg5[%c0_28, %c0_29] : memref<1x128xf32, #tpu.memory_space<vmem>>, vector<1x128xf32>
    %157 = vector.broadcast %156 : vector<1x128xf32> to vector<8x128xf32>
    %158 = arith.addf %155, %157 : vector<8x128xf32>
    %c0_30 = arith.constant 0 : index
    %c0_31 = arith.constant 0 : index
    %159 = vector.load %arg6[%c0_30, %c0_31] : memref<8x128xf32, #tpu.memory_space<vmem>>, vector<8x128xf32>
    tpu.vector_store %arg6[%c0_30, %c0_31], %158 {strides = array<i32>} : memref<8x128xf32, #tpu.memory_space<vmem>>, vector<8x128xf32>,
    return
  }
}

</mosaic_0001>

<llo_original>
// kernel: tpu_custom_call.1
$region0: #{tpu_custom_call.1}
  #allocation0 [shape = 'u32[]', space=smem, size = 0x4, offset = 0x4, fixed_abs, tag = 'smem constant byte address 0x4 - core index']
  #allocation1 [shape = 'u32[72,128]{1,0:T(1,128)}', space=vmem, size = 0x9000, scoped, tag = 'internal scratch']
  %s0 = inlined_call_operand.hbm [shape: f32[8,32], index: 0, kind: input, shape index: {}]
  %s1 = inlined_call_operand.hbm [shape: f32[32,128], index: 1, kind: input, shape index: {}]
  %s2 = inlined_call_operand.hbm [shape: f32[32,128], index: 2, kind: input, shape index: {}]
  %s3 = inlined_call_operand.vmem [shape: f32[1,128], index: 3, kind: input, shape index: {}]
  %s4 = inlined_call_operand.hbm [shape: f32[32,128], index: 4, kind: input, shape index: {}]
  %s5 = inlined_call_operand.vmem [shape: f32[1,128], index: 5, kind: input, shape index: {}]
  %s6 = inlined_call_operand.hbm [shape: f32[8,128], index: 6, kind: output, shape index: {}]
  %s7 = sld [smem:[#allocation0]]
  $region50: #{tpu_custom_call.1} parent=0
    _
  %s9 = ssub.s32 1, %s7
  %s10 = scalar_select 0, %s9, %s7
  $region1: #{tpu_custom_call.1} parent=0
    #allocation2 [shape = 'u8[4096]{0}', space=vmem, size = 0x1000, scoped, tag = 'input window, operand 0, single buffered']
    #allocation3 [shape = 's32[1]{0}', space=sflag, size = 0x4, scoped, tag = 'scoped memory for tpu_custom_call.1']
    #allocation4 [shape = 's32[1]{0}', space=sflag, size = 0x4, scoped, tag = 'scoped memory for tpu_custom_call.1']
    #allocation5 [shape = 'u8[16384]{0}', space=vmem, size = 0x4000, scoped, tag = 'input window, operand 1, single buffered']
    #allocation6 [shape = 's32[1]{0}', space=sflag, size = 0x4, scoped, tag = 'scoped memory for tpu_custom_call.1']
    #allocation7 [shape = 'u8[16384]{0}', space=vmem, size = 0x4000, scoped, tag = 'input window, operand 2, single buffered']
    #allocation8 [shape = 'u8[16384]{0}', space=vmem, size = 0x4000, scoped, tag = 'input window, operand 4, single buffered']
    #allocation9 [shape = 's32[1]{0}', space=sflag, size = 0x4, scoped, tag = 'scoped memory for tpu_custom_call.1']
    #allocation10 [shape = 'u8[4096]{0}', space=vmem, size = 0x1000, scoped, tag = 'output window, operand 0, single buffered']
    %11 = vsyncpa [#allocation3], 0
    %12 = vsyncpa [#allocation6], 0
    %13 = vsyncpa [#allocation9], 0
    %14 = vsyncpa [#allocation4], 0
    // Predicated region
    $region2: #{tpu_custom_call.1} parent=1 // pred_check
      _
    $region3: #{tpu_custom_call.1} parent=1 // pred_check_branch
      %16 = sbr.rel (0) target = $region5
    $region4: #{tpu_custom_call.1} parent=1 // pred_region
      %18 = vsyncadd [#allocation3], 0
      %s20 = sshll.u32 %s0, 4
      %s21 = int_to_ptr.hbm [resolvable:$true] %s20
      %s22 = sshll.u32 [#allocation2], 4
      %s23 = int_to_ptr.vmem [resolvable:$true] %s22
      %25 = dma.hbm_to_vmem [thread:$0]  %s21, 128, %s23, [#allocation3]
    $region5: #{tpu_custom_call.1} parent=1 // pred_fallthru
      _
    // Predicated region
    $region6: #{tpu_custom_call.1} parent=1 // pred_check
      _
    $region7: #{tpu_custom_call.1} parent=1 // pred_check_branch
      %27 = sbr.rel (0) target = $region9
    $region8: #{tpu_custom_call.1} parent=1 // pred_region
      %29 = vsyncadd [#allocation6], 0
      %s30 = sshll.u32 %s1, 4
      %s31 = int_to_ptr.hbm [resolvable:$true] %s30
      %s32 = sshll.u32 [#allocation5], 4
      %s33 = int_to_ptr.vmem [resolvable:$true] %s32
      %38 = dma.hbm_to_vmem [thread:$0]  %s31, 512, %s33, [#allocation6], 128, 128, 8
    $region9: #{tpu_custom_call.1} parent=1 // pred_fallthru
      _
    // Predicated region
    $region10: #{tpu_custom_call.1} parent=1 // pred_check
      _
    $region11: #{tpu_custom_call.1} parent=1 // pred_check_branch
      %40 = sbr.rel (0) target = $region13
    $region12: #{tpu_custom_call.1} parent=1 // pred_region
      %42 = vsyncadd [#allocation6], 0
      %s43 = sshll.u32 %s2, 4
      %s44 = int_to_ptr.hbm [resolvable:$true] %s43
      %s45 = sshll.u32 [#allocation7], 4
      %s46 = int_to_ptr.vmem [resolvable:$true] %s45
      %51 = dma.hbm_to_vmem [thread:$0]  %s44, 512, %s46, [#allocation6], 128, 128, 8
    $region13: #{tpu_custom_call.1} parent=1 // pred_fallthru
      _
    // Predicated region
    $region14: #{tpu_custom_call.1} parent=1 // pred_check
      _
    $region15: #{tpu_custom_call.1} parent=1 // pred_check_branch
      %53 = sbr.rel (0) target = $region17
    $region16: #{tpu_custom_call.1} parent=1 // pred_region
      _
    $region17: #{tpu_custom_call.1} parent=1 // pred_fallthru
      _
    // Predicated region
    $region18: #{tpu_custom_call.1} parent=1 // pred_check
      _
    $region19: #{tpu_custom_call.1} parent=1 // pred_check_branch
      %55 = sbr.rel (0) target = $region21
    $region20: #{tpu_custom_call.1} parent=1 // pred_region
      %57 = vsyncadd [#allocation9], 0
      %s58 = sshll.u32 %s4, 4
      %s59 = int_to_ptr.hbm [resolvable:$true] %s58
      %s60 = sshll.u32 [#allocation8], 4
      %s61 = int_to_ptr.vmem [resolvable:$true] %s60
      %66 = dma.hbm_to_vmem [thread:$0]  %s59, 512, %s61, [#allocation9], 128, 128, 8
    $region21: #{tpu_custom_call.1} parent=1 // pred_fallthru
      _
    // Predicated region
    $region22: #{tpu_custom_call.1} parent=1 // pred_check
      _
    $region23: #{tpu_custom_call.1} parent=1 // pred_check_branch
      %68 = sbr.rel (0) target = $region25
    $region24: #{tpu_custom_call.1} parent=1 // pred_region
      _
    $region25: #{tpu_custom_call.1} parent=1 // pred_fallthru
      _
    // Predicated region
    $region26: #{tpu_custom_call.1} parent=1 // pred_check
      _
    $region27: #{tpu_custom_call.1} parent=1 // pred_check_branch
      %70 = sbr.rel (0) target = $region29
    $region28: #{tpu_custom_call.1} parent=1 // pred_region
      %72 = dma.done [#allocation3], 128
    $region29: #{tpu_custom_call.1} parent=1 // pred_fallthru
      _
    // Predicated region
    $region30: #{tpu_custom_call.1} parent=1 // pred_check
      _
    $region31: #{tpu_custom_call.1} parent=1 // pred_check_branch
      %74 = sbr.rel (0) target = $region33
    $region32: #{tpu_custom_call.1} parent=1 // pred_region
      %76 = dma.done [#allocation6], 512
    $region33: #{tpu_custom_call.1} parent=1 // pred_fallthru
      _
    // Predicated region
    $region34: #{tpu_custom_call.1} parent=1 // pred_check
      _
    $region35: #{tpu_custom_call.1} parent=1 // pred_check_branch
      %78 = sbr.rel (0) target = $region37
    $region36: #{tpu_custom_call.1} parent=1 // pred_region
      %80 = dma.done [#allocation6], 512
    $region37: #{tpu_custom_call.1} parent=1 // pred_fallthru
      _
    // Predicated region
    $region38: #{tpu_custom_call.1} parent=1 // pred_check
      _
    $region39: #{tpu_custom_call.1} parent=1 // pred_check_branch
      %82 = sbr.rel (0) target = $region41
    $region40: #{tpu_custom_call.1} parent=1 // pred_region
      %84 = dma.done [#allocation9], 512
    $region41: #{tpu_custom_call.1} parent=1 // pred_fallthru
      _
    %v85 = vld [vmem:[#allocation2] sm:$0xff]
    %v86 = vld [vmem:[#allocation5] sm:$0xff]
    %v87 = vld [vmem:[#allocation5 + $0x8] sm:$0xff]
    %v88 = vld [vmem:[#allocation5 + $0x10] sm:$0xff]
    %v89 = vld [vmem:[#allocation5 + $0x18] sm:$0xff]
    %v90 = vld [vmem:[%s3] sm:$0x1]
    %v92 = vperm.slane %v90, 0
    %vm94 = vcmask 261120
    %v96 = vsel %vm94, %v85, 0
    %98 = vmatpush.msra.mxu0 0.0
    %99 = vmatpush.msra.mxu0 0.0
    %100 = vmatpush.msra.mxu0 0.0
    %101 = vmatpush.msra.mxu0 0.0
    %102 = vmatpush.msra.mxu0 0.0
    %103 = vmatpush.msra.mxu0 0.0
    %104 = vmatpush.msra.mxu0 0.0
    %105 = vmatpush.msra.mxu0 0.0
    %106 = vmatpush.msra.mxu0 0.0
    %107 = vmatpush.msra.mxu0 0.0
    %108 = vmatpush.msra.mxu0 0.0
    %109 = vmatpush.msra.mxu0 0.0
    %110 = vmatpush.msra.mxu0 %v89
    %111 = vmatpush.msra.mxu0 %v88
    %112 = vmatpush.msra.mxu0 %v87
    %113 = vmatpush.msra.mxu0 %v86
    %114 = vmatmul.f32.gmra.mxu0 %v96
    %v115 = vpop.f32.mrf.mxu0
    %v116 = vadd.f32 %v92, %v115
    %117 = vdwg.mxu0
    %v118 = vld [vmem:[#allocation7] sm:$0xff]
    %v119 = vld [vmem:[#allocation7 + $0x8] sm:$0xff]
    %v120 = vld [vmem:[#allocation7 + $0x10] sm:$0xff]
    %v121 = vld [vmem:[#allocation7 + $0x18] sm:$0xff]
    %v123 = vsel %vm94, 0.0, 0
    %125 = vmatpush.msra.mxu0 0.0
    %126 = vmatpush.msra.mxu0 0.0
    %127 = vmatpush.msra.mxu0 0.0
    %128 = vmatpush.msra.mxu0 0.0
    %129 = vmatpush.msra.mxu0 0.0
    %130 = vmatpush.msra.mxu0 0.0
    %131 = vmatpush.msra.mxu0 0.0
    %132 = vmatpush.msra.mxu0 0.0
    %133 = vmatpush.msra.mxu0 0.0
    %134 = vmatpush.msra.mxu0 0.0
    %135 = vmatpush.msra.mxu0 0.0
    %136 = vmatpush.msra.mxu0 0.0
    %137 = vmatpush.msra.mxu0 %v121
    %138 = vmatpush.msra.mxu0 %v120
    %139 = vmatpush.msra.mxu0 %v119
    %140 = vmatpush.msra.mxu0 %v118
    %141 = vmatmul.f32.gmra.mxu0 %v123
    %v142 = vpop.f32.mrf.mxu0
    %v143 = vadd.f32 0.0, %v142
    %144 = vdwg.mxu0
    %v145 = vadd.f32 %v116, %v143
    %v146 = vxor.u32 %v145, 2147483648
    %v147 = vmul.f32 %v146, 1.442695
    %v148 = vpow.pop %v147
    %v149 = vadd.f32 %v148, 1.0
    %v150 = vrcp.pop %v149
    %v151 = vmul.f32 %v149, %v150
    %v152 = vsub.f32 1.0, %v151
    %v153 = vmul.f32 %v150, %v152
    %v154 = vadd.f32 %v150, %v153
    %vm155 = vweird.f32 %v149
    %vm156 = vweird.f32 %v150
    %vm157 = vmor %vm155, %vm156
    %v158 = vsel %vm157, %v150, %v154
    %v159 = vand.u32 2147483647, %v149
    %vm160 = vcmp.eq.f32.partialorder %v159, 8.507059e+37
    %v161 = vand.u32 %v149, 2147483648
    %v162 = vor.u32 1.1754944e-38, %v161
    %v163 = vsel %vm160, %v162, %v158
    %v164 = vmul.f32 1.0, %v163
    %v165 = vtanh.pop %v145
    %v166 = vmul.f32 %v164, 0.0
    %168 = vrot.lane.b32.xlu0 %v165, 64
    %v169 = vpop.permute.xlu0 %168
    %v171 = vmul.f32 %v164, %v169
    %173 = vrot.lane.b32.xlu0 %v171, 32
    %v174 = vpop.permute.xlu0 %173
    %v176 = vadd.f32 %v166, %v174
    %v177 = vtanh.pop %v176
    %179 = vrot.lane.b32.xlu0 %v177, 64
    %v180 = vpop.permute.xlu0 %179
    %v182 = vmul.f32 %v164, %v180
    %184 = vrot.lane.b32.xlu0 %v182, 32
    %v185 = vpop.permute.xlu0 %184
    %v186 = vsel %vm94, %v185, 0
    %188 = vmatpush.msra.mxu0 0.0
    %189 = vmatpush.msra.mxu0 0.0
    %190 = vmatpush.msra.mxu0 0.0
    %191 = vmatpush.msra.mxu0 0.0
    %192 = vmatpush.msra.mxu0 0.0
    %193 = vmatpush.msra.mxu0 0.0
    %194 = vmatpush.msra.mxu0 0.0
    %195 = vmatpush.msra.mxu0 0.0
    %196 = vmatpush.msra.mxu0 0.0
    %197 = vmatpush.msra.mxu0 0.0
    %198 = vmatpush.msra.mxu0 0.0
    %199 = vmatpush.msra.mxu0 0.0
    %200 = vmatpush.msra.mxu0 %v121
    %201 = vmatpush.msra.mxu0 %v120
    %202 = vmatpush.msra.mxu0 %v119
    %203 = vmatpush.msra.mxu0 %v118
    %204 = vmatmul.f32.gmra.mxu0 %v186
    %v205 = vpop.f32.mrf.mxu0
    %v206 = vadd.f32 0.0, %v205
    %207 = vdwg.mxu0
    %v209 = vrot.slane %v206, 7
    %v211 = vadd.f32 %v116, %v209
    %v212 = vxor.u32 %v211, 2147483648
    %v213 = vmul.f32 %v212, 1.442695
    %v214 = vpow.pop %v213
    %v215 = vadd.f32 %v214, 1.0
    %v216 = vrcp.pop %v215
    %v217 = vmul.f32 %v215, %v216
    %v218 = vsub.f32 1.0, %v217
    %v219 = vmul.f32 %v216, %v218
    %v220 = vadd.f32 %v216, %v219
    %vm221 = vweird.f32 %v215
    %vm222 = vweird.f32 %v216
    %vm223 = vmor %vm221, %vm222
    %v224 = vsel %vm223, %v216, %v220
    %v225 = vand.u32 2147483647, %v215
    %vm226 = vcmp.eq.f32.partialorder %v225, 8.507059e+37
    %v227 = vand.u32 %v215, 2147483648
    %v228 = vor.u32 1.1754944e-38, %v227
    %v229 = vsel %vm226, %v228, %v224
    %v230 = vmul.f32 1.0, %v229
    %v231 = vtanh.pop %v211
    %v233 = vrot.slane %v176, 7
    %v235 = vmul.f32 %v230, %v233
    %237 = vrot.lane.b32.xlu0 %v231, 64
    %v238 = vpop.permute.xlu0 %237
    %v240 = vmul.f32 %v230, %v238
    %242 = vrot.lane.b32.xlu0 %v240, 32
    %v243 = vpop.permute.xlu0 %242
    %v245 = vadd.f32 %v235, %v243
    %v246 = vtanh.pop %v245
    %248 = vrot.lane.b32.xlu0 %v246, 64
    %v249 = vpop.permute.xlu0 %248
    %v251 = vmul.f32 %v230, %v249
    %v253 = vrot.slane %v251, 1
    %254 = vrot.lane.b32.xlu0 %v253, 32
    %v255 = vpop.permute.xlu0 %254
    %v256 = vsel %vm94, %v255, 0
    %258 = vmatpush.msra.mxu0 0.0
    %259 = vmatpush.msra.mxu0 0.0
    %260 = vmatpush.msra.mxu0 0.0
    %261 = vmatpush.msra.mxu0 0.0
    %262 = vmatpush.msra.mxu0 0.0
    %263 = vmatpush.msra.mxu0 0.0
    %264 = vmatpush.msra.mxu0 0.0
    %265 = vmatpush.msra.mxu0 0.0
    %266 = vmatpush.msra.mxu0 0.0
    %267 = vmatpush.msra.mxu0 0.0
    %268 = vmatpush.msra.mxu0 0.0
    %269 = vmatpush.msra.mxu0 0.0
    %270 = vmatpush.msra.mxu0 %v121
    %271 = vmatpush.msra.mxu0 %v120
    %272 = vmatpush.msra.mxu0 %v119
    %273 = vmatpush.msra.mxu0 %v118
    %274 = vmatmul.f32.gmra.mxu0 %v256
    %v275 = vpop.f32.mrf.mxu0
    %v276 = vadd.f32 0.0, %v275
    %277 = vdwg.mxu0
    %v279 = vrot.slane %v276, 6
    %v281 = vadd.f32 %v116, %v279
    %v282 = vxor.u32 %v281, 2147483648
    %v283 = vmul.f32 %v282, 1.442695
    %v284 = vpow.pop %v283
    %v285 = vadd.f32 %v284, 1.0
    %v286 = vrcp.pop %v285
    %v287 = vmul.f32 %v285, %v286
    %v288 = vsub.f32 1.0, %v287
    %v289 = vmul.f32 %v286, %v288
    %v290 = vadd.f32 %v286, %v289
    %vm291 = vweird.f32 %v285
    %vm292 = vweird.f32 %v286
    %vm293 = vmor %vm291, %vm292
    %v294 = vsel %vm293, %v286, %v290
    %v295 = vand.u32 2147483647, %v285
    %vm296 = vcmp.eq.f32.partialorder %v295, 8.507059e+37
    %v297 = vand.u32 %v285, 2147483648
    %v298 = vor.u32 1.1754944e-38, %v297
    %v299 = vsel %vm296, %v298, %v294
    %v300 = vmul.f32 1.0, %v299
    %v301 = vtanh.pop %v281
    %v303 = vrot.slane %v245, 7
    %v305 = vmul.f32 %v300, %v303
    %307 = vrot.lane.b32.xlu0 %v301, 64
    %v308 = vpop.permute.xlu0 %307
    %v310 = vmul.f32 %v300, %v308
    %312 = vrot.lane.b32.xlu0 %v310, 32
    %v313 = vpop.permute.xlu0 %312
    %v315 = vadd.f32 %v305, %v313
    %v316 = vtanh.pop %v315
    %318 = vrot.lane.b32.xlu0 %v316, 64
    %v319 = vpop.permute.xlu0 %318
    %v321 = vmul.f32 %v300, %v319
    %v323 = vrot.slane %v321, 2
    %324 = vrot.lane.b32.xlu0 %v323, 32
    %v325 = vpop.permute.xlu0 %324
    %v326 = vsel %vm94, %v325, 0
    %328 = vmatpush.msra.mxu0 0.0
    %329 = vmatpush.msra.mxu0 0.0
    %330 = vmatpush.msra.mxu0 0.0
    %331 = vmatpush.msra.mxu0 0.0
    %332 = vmatpush.msra.mxu0 0.0
    %333 = vmatpush.msra.mxu0 0.0
    %334 = vmatpush.msra.mxu0 0.0
    %335 = vmatpush.msra.mxu0 0.0
    %336 = vmatpush.msra.mxu0 0.0
    %337 = vmatpush.msra.mxu0 0.0
    %338 = vmatpush.msra.mxu0 0.0
    %339 = vmatpush.msra.mxu0 0.0
    %340 = vmatpush.msra.mxu0 %v121
    %341 = vmatpush.msra.mxu0 %v120
    %342 = vmatpush.msra.mxu0 %v119
    %343 = vmatpush.msra.mxu0 %v118
    %344 = vmatmul.f32.gmra.mxu0 %v326
    %v345 = vpop.f32.mrf.mxu0
    %v346 = vadd.f32 0.0, %v345
    %347 = vdwg.mxu0
    %v349 = vrot.slane %v346, 5
    %v351 = vadd.f32 %v116, %v349
    %v352 = vxor.u32 %v351, 2147483648
    %v353 = vmul.f32 %v352, 1.442695
    %v354 = vpow.pop %v353
    %v355 = vadd.f32 %v354, 1.0
    %v356 = vrcp.pop %v355
    %v357 = vmul.f32 %v355, %v356
    %v358 = vsub.f32 1.0, %v357
    %v359 = vmul.f32 %v356, %v358
    %v360 = vadd.f32 %v356, %v359
    %vm361 = vweird.f32 %v355
    %vm362 = vweird.f32 %v356
    %vm363 = vmor %vm361, %vm362
    %v364 = vsel %vm363, %v356, %v360
    %v365 = vand.u32 2147483647, %v355
    %vm366 = vcmp.eq.f32.partialorder %v365, 8.507059e+37
    %v367 = vand.u32 %v355, 2147483648
    %v368 = vor.u32 1.1754944e-38, %v367
    %v369 = vsel %vm366, %v368, %v364
    %v370 = vmul.f32 1.0, %v369
    %v371 = vtanh.pop %v351
    %v373 = vrot.slane %v315, 7
    %v375 = vmul.f32 %v370, %v373
    %377 = vrot.lane.b32.xlu0 %v371, 64
    %v378 = vpop.permute.xlu0 %377
    %v380 = vmul.f32 %v370, %v378
    %382 = vrot.lane.b32.xlu0 %v380, 32
    %v383 = vpop.permute.xlu0 %382
    %v385 = vadd.f32 %v375, %v383
    %v386 = vtanh.pop %v385
    %388 = vrot.lane.b32.xlu0 %v386, 64
    %v389 = vpop.permute.xlu0 %388
    %v391 = vmul.f32 %v370, %v389
    %v393 = vrot.slane %v391, 3
    %394 = vrot.lane.b32.xlu0 %v393, 32
    %v395 = vpop.permute.xlu0 %394
    %v396 = vsel %vm94, %v395, 0
    %398 = vmatpush.msra.mxu0 0.0
    %399 = vmatpush.msra.mxu0 0.0
    %400 = vmatpush.msra.mxu0 0.0
    %401 = vmatpush.msra.mxu0 0.0
    %402 = vmatpush.msra.mxu0 0.0
    %403 = vmatpush.msra.mxu0 0.0
    %404 = vmatpush.msra.mxu0 0.0
    %405 = vmatpush.msra.mxu0 0.0
    %406 = vmatpush.msra.mxu0 0.0
    %407 = vmatpush.msra.mxu0 0.0
    %408 = vmatpush.msra.mxu0 0.0
    %409 = vmatpush.msra.mxu0 0.0
    %410 = vmatpush.msra.mxu0 %v121
    %411 = vmatpush.msra.mxu0 %v120
    %412 = vmatpush.msra.mxu0 %v119
    %413 = vmatpush.msra.mxu0 %v118
    %414 = vmatmul.f32.gmra.mxu0 %v396
    %v415 = vpop.f32.mrf.mxu0
    %v416 = vadd.f32 0.0, %v415
    %417 = vdwg.mxu0
    %v419 = vrot.slane %v416, 4
    %v421 = vadd.f32 %v116, %v419
    %v422 = vxor.u32 %v421, 2147483648
    %v423 = vmul.f32 %v422, 1.442695
    %v424 = vpow.pop %v423
    %v425 = vadd.f32 %v424, 1.0
    %v426 = vrcp.pop %v425
    %v427 = vmul.f32 %v425, %v426
    %v428 = vsub.f32 1.0, %v427
    %v429 = vmul.f32 %v426, %v428
    %v430 = vadd.f32 %v426, %v429
    %vm431 = vweird.f32 %v425
    %vm432 = vweird.f32 %v426
    %vm433 = vmor %vm431, %vm432
    %v434 = vsel %vm433, %v426, %v430
    %v435 = vand.u32 2147483647, %v425
    %vm436 = vcmp.eq.f32.partialorder %v435, 8.507059e+37
    %v437 = vand.u32 %v425, 2147483648
    %v438 = vor.u32 1.1754944e-38, %v437
    %v439 = vsel %vm436, %v438, %v434
    %v440 = vmul.f32 1.0, %v439
    %v441 = vtanh.pop %v421
    %v443 = vrot.slane %v385, 7
    %v445 = vmul.f32 %v440, %v443
    %447 = vrot.lane.b32.xlu0 %v441, 64
    %v448 = vpop.permute.xlu0 %447
    %v450 = vmul.f32 %v440, %v448
    %452 = vrot.lane.b32.xlu0 %v450, 32
    %v453 = vpop.permute.xlu0 %452
    %v455 = vadd.f32 %v445, %v453
    %v456 = vtanh.pop %v455
    %458 = vrot.lane.b32.xlu0 %v456, 64
    %v459 = vpop.permute.xlu0 %458
    %v461 = vmul.f32 %v440, %v459
    %v463 = vrot.slane %v461, 4
    %464 = vrot.lane.b32.xlu0 %v463, 32
    %v465 = vpop.permute.xlu0 %464
    %v466 = vsel %vm94, %v465, 0
    %468 = vmatpush.msra.mxu0 0.0
    %469 = vmatpush.msra.mxu0 0.0
    %470 = vmatpush.msra.mxu0 0.0
    %471 = vmatpush.msra.mxu0 0.0
    %472 = vmatpush.msra.mxu0 0.0
    %473 = vmatpush.msra.mxu0 0.0
    %474 = vmatpush.msra.mxu0 0.0
    %475 = vmatpush.msra.mxu0 0.0
    %476 = vmatpush.msra.mxu0 0.0
    %477 = vmatpush.msra.mxu0 0.0
    %478 = vmatpush.msra.mxu0 0.0
    %479 = vmatpush.msra.mxu0 0.0
    %480 = vmatpush.msra.mxu0 %v121
    %481 = vmatpush.msra.mxu0 %v120
    %482 = vmatpush.msra.mxu0 %v119
    %483 = vmatpush.msra.mxu0 %v118
    %484 = vmatmul.f32.gmra.mxu0 %v466
    %v485 = vpop.f32.mrf.mxu0
    %v486 = vadd.f32 0.0, %v485
    %487 = vdwg.mxu0
    %v489 = vrot.slane %v486, 3
    %v491 = vadd.f32 %v116, %v489
    %v492 = vxor.u32 %v491, 2147483648
    %v493 = vmul.f32 %v492, 1.442695
    %v494 = vpow.pop %v493
    %v495 = vadd.f32 %v494, 1.0
    %v496 = vrcp.pop %v495
    %v497 = vmul.f32 %v495, %v496
    %v498 = vsub.f32 1.0, %v497
    %v499 = vmul.f32 %v496, %v498
    %v500 = vadd.f32 %v496, %v499
    %vm501 = vweird.f32 %v495
    %vm502 = vweird.f32 %v496
    %vm503 = vmor %vm501, %vm502
    %v504 = vsel %vm503, %v496, %v500
    %v505 = vand.u32 2147483647, %v495
    %vm506 = vcmp.eq.f32.partialorder %v505, 8.507059e+37
    %v507 = vand.u32 %v495, 2147483648
    %v508 = vor.u32 1.1754944e-38, %v507
    %v509 = vsel %vm506, %v508, %v504
    %v510 = vmul.f32 1.0, %v509
    %v511 = vtanh.pop %v491
    %v513 = vrot.slane %v455, 7
    %v515 = vmul.f32 %v510, %v513
    %517 = vrot.lane.b32.xlu0 %v511, 64
    %v518 = vpop.permute.xlu0 %517
    %v520 = vmul.f32 %v510, %v518
    %522 = vrot.lane.b32.xlu0 %v520, 32
    %v523 = vpop.permute.xlu0 %522
    %v525 = vadd.f32 %v515, %v523
    %v526 = vtanh.pop %v525
    %528 = vrot.lane.b32.xlu0 %v526, 64
    %v529 = vpop.permute.xlu0 %528
    %v531 = vmul.f32 %v510, %v529
    %v533 = vrot.slane %v531, 5
    %534 = vrot.lane.b32.xlu0 %v533, 32
    %v535 = vpop.permute.xlu0 %534
    %v536 = vsel %vm94, %v535, 0
    %538 = vmatpush.msra.mxu0 0.0
    %539 = vmatpush.msra.mxu0 0.0
    %540 = vmatpush.msra.mxu0 0.0
    %541 = vmatpush.msra.mxu0 0.0
    %542 = vmatpush.msra.mxu0 0.0
    %543 = vmatpush.msra.mxu0 0.0
    %544 = vmatpush.msra.mxu0 0.0
    %545 = vmatpush.msra.mxu0 0.0
    %546 = vmatpush.msra.mxu0 0.0
    %547 = vmatpush.msra.mxu0 0.0
    %548 = vmatpush.msra.mxu0 0.0
    %549 = vmatpush.msra.mxu0 0.0
    %550 = vmatpush.msra.mxu0 %v121
    %551 = vmatpush.msra.mxu0 %v120
    %552 = vmatpush.msra.mxu0 %v119
    %553 = vmatpush.msra.mxu0 %v118
    %554 = vmatmul.f32.gmra.mxu0 %v536
    %v555 = vpop.f32.mrf.mxu0
    %v556 = vadd.f32 0.0, %v555
    %557 = vdwg.mxu0
    %v559 = vrot.slane %v556, 2
    %v561 = vadd.f32 %v116, %v559
    %v562 = vxor.u32 %v561, 2147483648
    %v563 = vmul.f32 %v562, 1.442695
    %v564 = vpow.pop %v563
    %v565 = vadd.f32 %v564, 1.0
    %v566 = vrcp.pop %v565
    %v567 = vmul.f32 %v565, %v566
    %v568 = vsub.f32 1.0, %v567
    %v569 = vmul.f32 %v566, %v568
    %v570 = vadd.f32 %v566, %v569
    %vm571 = vweird.f32 %v565
    %vm572 = vweird.f32 %v566
    %vm573 = vmor %vm571, %vm572
    %v574 = vsel %vm573, %v566, %v570
    %v575 = vand.u32 2147483647, %v565
    %vm576 = vcmp.eq.f32.partialorder %v575, 8.507059e+37
    %v577 = vand.u32 %v565, 2147483648
    %v578 = vor.u32 1.1754944e-38, %v577
    %v579 = vsel %vm576, %v578, %v574
    %v580 = vmul.f32 1.0, %v579
    %v581 = vtanh.pop %v561
    %v583 = vrot.slane %v525, 7
    %v585 = vmul.f32 %v580, %v583
    %587 = vrot.lane.b32.xlu0 %v581, 64
    %v588 = vpop.permute.xlu0 %587
    %v590 = vmul.f32 %v580, %v588
    %592 = vrot.lane.b32.xlu0 %v590, 32
    %v593 = vpop.permute.xlu0 %592
    %v595 = vadd.f32 %v585, %v593
    %v596 = vtanh.pop %v595
    %598 = vrot.lane.b32.xlu0 %v596, 64
    %v599 = vpop.permute.xlu0 %598
    %v601 = vmul.f32 %v580, %v599
    %v603 = vrot.slane %v601, 6
    %604 = vrot.lane.b32.xlu0 %v603, 32
    %v605 = vpop.permute.xlu0 %604
    %v606 = vsel %vm94, %v605, 0
    %608 = vmatpush.msra.mxu0 0.0
    %609 = vmatpush.msra.mxu0 0.0
    %610 = vmatpush.msra.mxu0 0.0
    %611 = vmatpush.msra.mxu0 0.0
    %612 = vmatpush.msra.mxu0 0.0
    %613 = vmatpush.msra.mxu0 0.0
    %614 = vmatpush.msra.mxu0 0.0
    %615 = vmatpush.msra.mxu0 0.0
    %616 = vmatpush.msra.mxu0 0.0
    %617 = vmatpush.msra.mxu0 0.0
    %618 = vmatpush.msra.mxu0 0.0
    %619 = vmatpush.msra.mxu0 0.0
    %620 = vmatpush.msra.mxu0 %v121
    %621 = vmatpush.msra.mxu0 %v120
    %622 = vmatpush.msra.mxu0 %v119
    %623 = vmatpush.msra.mxu0 %v118
    %624 = vmatmul.f32.gmra.mxu0 %v606
    %v625 = vpop.f32.mrf.mxu0
    %v626 = vadd.f32 0.0, %v625
    %627 = vdwg.mxu0
    %v629 = vrot.slane %v626, 1
    %v631 = vadd.f32 %v116, %v629
    %v632 = vxor.u32 %v631, 2147483648
    %v633 = vmul.f32 %v632, 1.442695
    %v634 = vpow.pop %v633
    %v635 = vadd.f32 %v634, 1.0
    %v636 = vrcp.pop %v635
    %v637 = vmul.f32 %v635, %v636
    %v638 = vsub.f32 1.0, %v637
    %v639 = vmul.f32 %v636, %v638
    %v640 = vadd.f32 %v636, %v639
    %vm641 = vweird.f32 %v635
    %vm642 = vweird.f32 %v636
    %vm643 = vmor %vm641, %vm642
    %v644 = vsel %vm643, %v636, %v640
    %v645 = vand.u32 2147483647, %v635
    %vm646 = vcmp.eq.f32.partialorder %v645, 8.507059e+37
    %v647 = vand.u32 %v635, 2147483648
    %v648 = vor.u32 1.1754944e-38, %v647
    %v649 = vsel %vm646, %v648, %v644
    %v650 = vmul.f32 1.0, %v649
    %v651 = vtanh.pop %v631
    %v653 = vrot.slane %v595, 7
    %v655 = vmul.f32 %v650, %v653
    %657 = vrot.lane.b32.xlu0 %v651, 64
    %v658 = vpop.permute.xlu0 %657
    %v660 = vmul.f32 %v650, %v658
    %662 = vrot.lane.b32.xlu0 %v660, 32
    %v663 = vpop.permute.xlu0 %662
    %v665 = vadd.f32 %v655, %v663
    %v666 = vtanh.pop %v665
    %668 = vrot.lane.b32.xlu0 %v666, 64
    %v669 = vpop.permute.xlu0 %668
    %v671 = vmul.f32 %v650, %v669
    %vm672 = vcmask 1040384
    %v673 = vsel %vm672, %v182, %v251
    %vm674 = vcmask 1041408
    %v675 = vsel %vm674, %v673, %v321
    %vm676 = vcmask 1042432
    %v677 = vsel %vm676, %v675, %v391
    %vm678 = vcmask 1043456
    %v679 = vsel %vm678, %v677, %v461
    %vm680 = vcmask 1044480
    %v681 = vsel %vm680, %v679, %v531
    %vm682 = vcmask 1045504
    %v683 = vsel %vm682, %v681, %v601
    %vm684 = vcmask 1046528
    %v685 = vsel %vm684, %v683, %v671
    %v686 = vld [vmem:[#allocation8] sm:$0xff]
    %v687 = vld [vmem:[#allocation8 + $0x8] sm:$0xff]
    %v688 = vld [vmem:[#allocation8 + $0x10] sm:$0xff]
    %v689 = vld [vmem:[#allocation8 + $0x18] sm:$0xff]
    %v690 = vld [vmem:[%s5] sm:$0x1]
    %v692 = vperm.slane %v690, 0
    %695 = vrot.lane.b32.xlu0 %v685, 32
    %v696 = vpop.permute.xlu0 %695
    %v697 = vsel %vm94, %v696, 0
    %699 = vmatpush.msra.mxu0 0.0
    %700 = vmatpush.msra.mxu0 0.0
    %701 = vmatpush.msra.mxu0 0.0
    %702 = vmatpush.msra.mxu0 0.0
    %703 = vmatpush.msra.mxu0 0.0
    %704 = vmatpush.msra.mxu0 0.0
    %705 = vmatpush.msra.mxu0 0.0
    %706 = vmatpush.msra.mxu0 0.0
    %707 = vmatpush.msra.mxu0 0.0
    %708 = vmatpush.msra.mxu0 0.0
    %709 = vmatpush.msra.mxu0 0.0
    %710 = vmatpush.msra.mxu0 0.0
    %711 = vmatpush.msra.mxu0 %v689
    %712 = vmatpush.msra.mxu0 %v688
    %713 = vmatpush.msra.mxu0 %v687
    %714 = vmatpush.msra.mxu0 %v686
    %715 = vmatmul.f32.gmra.mxu0 %v697
    %v716 = vpop.f32.mrf.mxu0
    %v717 = vadd.f32 %v692, %v716
    %718 = vdwg.mxu0
    %719 = vst [vmem:[#allocation10] sm:$0xff] %v717
    // Predicated region
    $region42: #{tpu_custom_call.1} parent=1 // pred_check
      _
    $region43: #{tpu_custom_call.1} parent=1 // pred_check_branch
      %721 = sbr.rel (0) target = $region45
    $region44: #{tpu_custom_call.1} parent=1 // pred_region
      %723 = vsyncadd [#allocation4], 0
      %s725 = sshll.u32 [#allocation10], 4
      %s726 = int_to_ptr.vmem [resolvable:$true] %s725
      %s727 = sshll.u32 %s6, 4
      %s728 = int_to_ptr.hbm [resolvable:$true] %s727
      %730 = dma.vmem_to_hbm [thread:$0]  %s726, 128, %s728, [#allocation4]
    $region45: #{tpu_custom_call.1} parent=1 // pred_fallthru
      _
    // Predicated region
    $region46: #{tpu_custom_call.1} parent=1 // pred_check
      _
    $region47: #{tpu_custom_call.1} parent=1 // pred_check_branch
      %732 = sbr.rel (0) target = $region49
    $region48: #{tpu_custom_call.1} parent=1 // pred_region
      %734 = dma.done [#allocation4], 128
    $region49: #{tpu_custom_call.1} parent=1 // pred_fallthru
      _
    %735 = vsyncpa [#allocation3], 1
    %736 = vsyncpa [#allocation6], 1
    %737 = vsyncpa [#allocation9], 1
    %738 = vsyncpa [#allocation4], 1

</llo_original>
